<compile_context>
chip_gen: v6e
topology: v6e:2x2x1
jax: 0.10.0
libtpu: 0.0.40
codegen_flags: <defaults>
</compile_context>

<pallas_src>
import functools

import jax
import jax.numpy as jnp
from jax import lax
from jax.experimental import pallas as pl
from jax.experimental.pallas import tpu as pltpu

_MIB = 1024 * 1024


def _round_up(x: int, m: int) -> int:
    return ((x + m - 1) // m) * m


def _cdiv(a: int, b: int) -> int:
    return -(-a // b)


def _sublane(dtype) -> int:
    """Packed sublane granularity: 8 for 4-byte, 16 for 2-byte, 32 for 1-byte."""
    itemsize = jnp.dtype(dtype).itemsize
    return max(8, 32 // max(itemsize, 1))


def _vmem_capacity_bytes() -> int:
    try:
        info = pltpu.get_tpu_info()
        cap = int(getattr(info, "vmem_capacity_bytes", 0) or 0)
        if cap > 0:
            return cap
    except Exception:
        pass
    return 64 * _MIB  # conservative fallback (v7x per-TensorCore)


_VMEM_CAPACITY = _vmem_capacity_bytes()
if _VMEM_CAPACITY >= 128 * _MIB:
    # v5e / v6e: 128 MiB physical -> spend it on bigger tiles.
    _VMEM_LIMIT = 100 * _MIB
    _VMEM_BUDGET = 92 * _MIB
else:
    # v7x: 64 MiB per TensorCore -> stay comfortably below.
    _VMEM_LIMIT = 48 * _MIB
    _VMEM_BUDGET = 40 * _MIB


def _pairwise_dist_kernel(a_ref, b_ref, sq_row_ref, sq_col_ref, out_ref, acc_ref):
    """One grid step (i, j, k): partial dot of a row tile vs. a column tile.

    a_ref      : (TM, TK)  row-tile slice of embeddings (matmul dtype)
    b_ref      : (TN, TK)  column-tile slice of embeddings (matmul dtype)
    sq_row_ref : (TM, 1)   precomputed squared norms of the row tile (f32)
    sq_col_ref : (1, TN)   precomputed squared norms of the column tile (f32)
    out_ref    : (TM, TN)  clamped squared distances (f32), written at k==last
    acc_ref    : (TM, TN)  f32 accumulator scratch across the K axis
    """
    k = pl.program_id(2)

    @pl.when(k == 0)
    def _():
        acc_ref[...] = jnp.zeros_like(acc_ref)

    # a @ b.T without materializing a transpose: contract last dim of both.
    acc_ref[...] += lax.dot_general(
        a_ref[...], b_ref[...],
        dimension_numbers=(((1,), (1,)), ((), ())),
        preferred_element_type=jnp.float32,
    )

    @pl.when(k == pl.num_programs(2) - 1)
    def _():
        dist = (sq_row_ref[...] - 2.0 * acc_ref[...]) + sq_col_ref[...]
        out_ref[...] = jnp.maximum(dist, 0.0).astype(out_ref.dtype)


def _plan_tiles(n: int, d: int, matmul_dtype, tile_m: int, tile_n: int, tile_k: int):
    """Pick legal, VMEM-budgeted tile sizes (pure Python ints)."""
    sublane = _sublane(matmul_dtype)
    dtype_bytes = jnp.dtype(matmul_dtype).itemsize

    # Clamp to the problem size while keeping TPU layout constraints:
    # sublane tiles multiple of the packed granularity, lane tiles multiple of 128.
    tile_m = max(sublane, _round_up(min(tile_m, _round_up(n, sublane)), sublane))
    tile_n = max(128, _round_up(min(tile_n, _round_up(n, 128)), 128))
    if d <= tile_k:
        tile_k = d                     # single K block; may equal full dim
    else:
        tile_k = max(128, _round_up(tile_k, 128))

    def footprint(tm, tn, tk):
        ab = 2 * (tm + tn) * tk * dtype_bytes   # double-buffered a/b tiles
        out = 2 * tm * tn * 4                   # double-buffered out tile
        acc = tm * tn * 4                       # accumulator scratch
        norms = 4 * (tm + tn) * 4               # (TM,1)/(1,TN) norm tiles
        return ab + out + acc + norms

    # Shrink TN first, then TK, then TM (TM is the B-reuse lever: keep >=256).
    while footprint(tile_m, tile_n, tile_k) > _VMEM_BUDGET:
        if tile_n > 256:
            tile_n //= 2
        elif tile_k > 256:
            tile_k = _round_up(tile_k // 2, 128)
        elif tile_m > 256:
            tile_m = max(sublane, _round_up(tile_m // 2, sublane))
        else:
            break

    # Keep at least one 2-wide parallel grid axis so both TensorCores on a
    # v7x chip get work (harmless on single-TC v5e/v6e).
    if n >= 128 and _cdiv(n, tile_m) == 1 and _cdiv(n, tile_n) == 1:
        tile_m = max(sublane, _round_up(tile_m // 2, sublane))

    return tile_m, tile_n, tile_k


@functools.partial(
    jax.jit, static_argnames=("tile_m", "tile_n", "tile_k", "use_bf16_matmul"))
def _pairwise_dist_impl(embeddings, *, tile_m, tile_n, tile_k, use_bf16_matmul):
    n, d = embeddings.shape

    matmul_dtype = jnp.bfloat16 if use_bf16_matmul else embeddings.dtype
    tile_m, tile_n, tile_k = _plan_tiles(n, d, matmul_dtype, tile_m, tile_n, tile_k)

    grid_m = _cdiv(n, tile_m)
    grid_n = _cdiv(n, tile_n)
    grid_k = _cdiv(d, tile_k)

    # Zero-pad only the cheap (N, D) operand so every input block is fully in
    # bounds; the (N, N) output itself is NOT padded (ragged boundary output
    # blocks are masked on store), so there is no post-kernel slice/copy.
    n_rows = max(grid_m * tile_m, grid_n * tile_n)
    d_pad = grid_k * tile_k
    emb = embeddings
    if n_rows != n or d_pad != d:
        emb = jnp.pad(emb, ((0, n_rows - n), (0, d_pad - d)))

    # Squared norms computed once in f32 (zero-padding does not change them),
    # streamed as a (TM,1) column and a lane-dense (1,TN) row.
    emb_f32 = emb.astype(jnp.float32)
    sq = jnp.sum(emb_f32 * emb_f32, axis=-1)
    sq_row = sq.reshape(n_rows, 1)
    sq_col = sq.reshape(1, n_rows)

    emb_mm = emb.astype(matmul_dtype)

    out = pl.pallas_call(
        _pairwise_dist_kernel,
        out_shape=jax.ShapeDtypeStruct((n, n), jnp.float32),
        grid_spec=pltpu.PrefetchScalarGridSpec(
            num_scalar_prefetch=0,
            grid=(grid_m, grid_n, grid_k),
            in_specs=[
                # row tile of embeddings (feature slice k)
                pl.BlockSpec((tile_m, tile_k), lambda i, j, k: (i, k)),
                # column tile of embeddings (feature slice k)
                pl.BlockSpec((tile_n, tile_k), lambda i, j, k: (j, k)),
                # precomputed norms for the row tile
                pl.BlockSpec((tile_m, 1), lambda i, j, k: (i, 0)),
                # precomputed norms for the column tile
                pl.BlockSpec((1, tile_n), lambda i, j, k: (0, j)),
            ],
            out_specs=pl.BlockSpec((tile_m, tile_n), lambda i, j, k: (i, j)),
            scratch_shapes=[pltpu.VMEM((tile_m, tile_n), jnp.float32)],
        ),
        compiler_params=pltpu.CompilerParams(
            # i/j independent (shards across the 2 TCs on v7x); k is the
            # reduction axis revisiting the output block -> "arbitrary", last.
            dimension_semantics=("parallel", "parallel", "arbitrary"),
            vmem_limit_bytes=_VMEM_LIMIT,
        ),
    )(emb_mm, emb_mm, sq_row, sq_col)
    return out


def pairwise_dist(embeddings: jax.Array,
                  tile_m: int = 512,
                  tile_n: int = 512,
                  tile_k: int = 1024,
                  use_bf16_matmul: bool = False) -> jax.Array:
    """Pallas equivalent of TripletMiner._pairwise_dist.

    embeddings: (N, D) float array. Returns (N, N) float32.
    """
    return _pairwise_dist_impl(embeddings, tile_m=tile_m, tile_n=tile_n,
                               tile_k=tile_k, use_bf16_matmul=use_bf16_matmul)


class TripletMiner:
    """JAX/Pallas port of the PyTorch TripletMiner base class."""

    def __init__(self, margin: float = 0.5) -> None:
        self.margin = margin

    def _pairwise_dist(self, embeddings: jax.Array) -> jax.Array:
        return pairwise_dist(embeddings)

    def __call__(self, ids: jax.Array, embeddings: jax.Array):
        # TODO(synk): base class forward raises NotImplementedError in PyTorch;
        # once a mining subclass exists, fuse its per-row hardest-pos/neg
        # reduction into the kernel (accumulate over the j axis) so the (N, N)
        # matrix never hits HBM.
        raise NotImplementedError("Mining function not implemented yet!")


def _reference_pairwise_dist(embeddings: jax.Array) -> jax.Array:
    e = embeddings.astype(jnp.float32)
    dot = e @ e.T
    sq = jnp.diag(dot)
    dist = sq[None, :] - 2.0 * dot + sq[:, None]
    return jnp.maximum(dist, 0.0)


if __name__ == "__main__":
    key = jax.random.PRNGKey(0)
    k_emb, k_ids = jax.random.split(key)

    # Small shapes consistent with the module: 16 samples, 32-dim embeddings.
    N, D = 16, 32
    embeddings = jax.random.normal(k_emb, (N, D), dtype=jnp.float32)
    ids = jax.random.randint(k_ids, (N,), 0, 4)  # labels (unused by base class)

    miner = TripletMiner(margin=0.5)
    out = jax.block_until_ready(miner._pairwise_dist(embeddings))
    ref = jax.block_until_ready(_reference_pairwise_dist(embeddings))
    assert out.shape == (N, N)
    assert jnp.allclose(out, ref, atol=1e-4, rtol=1e-4), "mismatch vs reference"

    # Non-tile-aligned, multi-tile size: exercises masked ragged output blocks
    # (no post-kernel slice) and explicit user tiles.
    emb2 = jax.random.normal(jax.random.PRNGKey(1), (200, 96), dtype=jnp.float32)
    out2 = jax.block_until_ready(pairwise_dist(emb2, tile_m=64, tile_n=128))
    ref2 = jax.block_until_ready(_reference_pairwise_dist(emb2))
    assert out2.shape == (200, 200)
    assert jnp.allclose(out2, ref2, atol=2e-3, rtol=1e-3), "mismatch (ragged path)"

    # Wide-embedding path: K-axis accumulator across 3 feature tiles.
    emb3 = jax.random.normal(jax.random.PRNGKey(2), (128, 384), dtype=jnp.float32)
    out3 = jax.block_until_ready(pairwise_dist(emb3, tile_k=128))
    ref3 = jax.block_until_ready(_reference_pairwise_dist(emb3))
    assert jnp.allclose(out3, ref3, atol=5e-2, rtol=1e-3), "mismatch (K-split path)"

    # bf16 MXU-input option (norms / accumulation / output stay f32).
    emb4 = jax.random.normal(jax.random.PRNGKey(3), (128, 256), dtype=jnp.float32)
    out4 = jax.block_until_ready(pairwise_dist(emb4, use_bf16_matmul=True))
    ref4 = jax.block_until_ready(_reference_pairwise_dist(emb4))
    assert jnp.allclose(out4, ref4, atol=2.0, rtol=5e-2), "mismatch (bf16 path)"

    print("KERNEL_OK")
</pallas_src>

<mosaic_0001>
module attributes {stable_mosaic.version = 11 : i64} {
  func.func @_pairwise_dist_kernel(%arg0: i32, %arg1: i32, %arg2: i32, %arg3: memref<16x32xf32, #tpu.memory_space<vmem>>, %arg4: memref<128x32xf32, #tpu.memory_space<vmem>>, %arg5: memref<16x1xf32, #tpu.memory_space<vmem>>, %arg6: memref<1x128xf32, #tpu.memory_space<vmem>>, %arg7: memref<16x128xf32, #tpu.memory_space<vmem>>, %arg8: memref<16x128xf32, #tpu.memory_space<vmem>>) attributes {dimension_semantics = [#tpu.dimension_semantics<parallel>, #tpu.dimension_semantics<parallel>, #tpu.dimension_semantics<arbitrary>], iteration_bounds = array<i64: 1, 1, 1>, scalar_prefetch = 0 : i64, scratch_operands = 1 : i64, tpu.core_type = #tpu.core_type<tc>, window_params = [{transform_indices = @transform_0, window_bounds = array<i64: 16, 32>}, {transform_indices = @transform_1, window_bounds = array<i64: 128, 32>}, {transform_indices = @transform_2, window_bounds = array<i64: 16, 1>}, {transform_indices = @transform_3, window_bounds = array<i64: 1, 128>}, {transform_indices = @transform_4, window_bounds = array<i64: 16, 128>}]} {
    %c0_i32 = arith.constant 0 : i32
    %0 = arith.cmpi eq, %arg2, %c0_i32 : i32
    %1 = arith.extui %0 : i1 to i32
    %c0_i32_0 = arith.constant 0 : i32
    %2 = arith.cmpi ne, %1, %c0_i32_0 : i32
    scf.if %2 {
      %cst_10 = arith.constant 0.000000e+00 : f32
      %12 = vector.broadcast %cst_10 : f32 to vector<16x128xf32>
      %c0_11 = arith.constant 0 : index
      %c0_12 = arith.constant 0 : index
      %13 = vector.load %arg8[%c0_11, %c0_12] : memref<16x128xf32, #tpu.memory_space<vmem>>, vector<16x128xf32>
      tpu.vector_store %arg8[%c0_11, %c0_12], %12 {strides = array<i32>} : memref<16x128xf32, #tpu.memory_space<vmem>>, vector<16x128xf32>,
    } else {
    }
    %c0 = arith.constant 0 : index
    %c0_1 = arith.constant 0 : index
    %3 = vector.load %arg8[%c0, %c0_1] : memref<16x128xf32, #tpu.memory_space<vmem>>, vector<16x128xf32>
    %c0_2 = arith.constant 0 : index
    %c0_3 = arith.constant 0 : index
    %4 = vector.load %arg3[%c0_2, %c0_3] : memref<16x32xf32, #tpu.memory_space<vmem>>, vector<16x32xf32>
    %c0_4 = arith.constant 0 : index
    %c0_5 = arith.constant 0 : index
    %5 = vector.load %arg4[%c0_4, %c0_5] : memref<128x32xf32, #tpu.memory_space<vmem>>, vector<128x32xf32>
    %cst = arith.constant dense<0.000000e+00> : vector<16x128xf32>
    %6 = tpu.matmul %4, %5, %cst {dimension_numbers = #tpu.dot_dimension_numbers<[1], [1], [0], [0], [0, 0, 1, 0], [], []>} : vector<16x32xf32>, vector<128x32xf32>, vector<16x128xf32> -> vector<16x128xf32>
    %7 = arith.addf %3, %6 : vector<16x128xf32>
    %c0_6 = arith.constant 0 : index
    %c0_7 = arith.constant 0 : index
    %8 = vector.load %arg8[%c0_6, %c0_7] : memref<16x128xf32, #tpu.memory_space<vmem>>, vector<16x128xf32>
    tpu.vector_store %arg8[%c0_6, %c0_7], %7 {strides = array<i32>} : memref<16x128xf32, #tpu.memory_space<vmem>>, vector<16x128xf32>,
    %c0_i32_8 = arith.constant 0 : i32
    %9 = arith.cmpi eq, %arg2, %c0_i32_8 : i32
    %10 = arith.extui %9 : i1 to i32
    %c0_i32_9 = arith.constant 0 : i32
    %11 = arith.cmpi ne, %10, %c0_i32_9 : i32
    scf.if %11 {
      %c0_10 = arith.constant 0 : index
      %c0_11 = arith.constant 0 : index
      %12 = vector.load %arg5[%c0_10, %c0_11] : memref<16x1xf32, #tpu.memory_space<vmem>>, vector<16x1xf32>
      %c0_12 = arith.constant 0 : index
      %c0_13 = arith.constant 0 : index
      %13 = vector.load %arg8[%c0_12, %c0_13] : memref<16x128xf32, #tpu.memory_space<vmem>>, vector<16x128xf32>
      %cst_14 = arith.constant 2.000000e+00 : f32
      %14 = vector.broadcast %cst_14 : f32 to vector<16x128xf32>
      %15 = arith.mulf %14, %13 : vector<16x128xf32>
      %16 = vector.broadcast %12 : vector<16x1xf32> to vector<16x128xf32>
      %17 = arith.subf %16, %15 : vector<16x128xf32>
      %c0_15 = arith.constant 0 : index
      %c0_16 = arith.constant 0 : index
      %18 = vector.load %arg6[%c0_15, %c0_16] : memref<1x128xf32, #tpu.memory_space<vmem>>, vector<1x128xf32>
      %19 = vector.broadcast %18 : vector<1x128xf32> to vector<16x128xf32>
      %20 = arith.addf %17, %19 : vector<16x128xf32>
      %cst_17 = arith.constant 0.000000e+00 : f32
      %21 = vector.broadcast %cst_17 : f32 to vector<16x128xf32>
      %22 = arith.maximumf %20, %21 : vector<16x128xf32>
      %c0_18 = arith.constant 0 : index
      %c0_19 = arith.constant 0 : index
      %23 = vector.load %arg7[%c0_18, %c0_19] : memref<16x128xf32, #tpu.memory_space<vmem>>, vector<16x128xf32>
      tpu.vector_store %arg7[%c0_18, %c0_19], %22 {strides = array<i32>} : memref<16x128xf32, #tpu.memory_space<vmem>>, vector<16x128xf32>,
    } else {
    }
    return
  }
  func.func @transform_0(%arg0: i32, %arg1: i32, %arg2: i32) -> (i32, i32) {
    %c0_i32 = arith.constant 0 : i32
    return %arg0, %arg2 : i32, i32
  }
  func.func @transform_1(%arg0: i32, %arg1: i32, %arg2: i32) -> (i32, i32) {
    %c0_i32 = arith.constant 0 : i32
    return %arg1, %arg2 : i32, i32
  }
  func.func @transform_2(%arg0: i32, %arg1: i32, %arg2: i32) -> (i32, i32) {
    %c0_i32 = arith.constant 0 : i32
    %c0_i32_0 = arith.constant 0 : i32
    return %arg0, %c0_i32 : i32, i32
  }
  func.func @transform_3(%arg0: i32, %arg1: i32, %arg2: i32) -> (i32, i32) {
    %c0_i32 = arith.constant 0 : i32
    %c0_i32_0 = arith.constant 0 : i32
    return %c0_i32, %arg1 : i32, i32
  }
  func.func @transform_4(%arg0: i32, %arg1: i32, %arg2: i32) -> (i32, i32) {
    %c0_i32 = arith.constant 0 : i32
    return %arg0, %arg1 : i32, i32
  }
}

</mosaic_0001>

<llo_original>
// kernel: _pairwise_dist_impl.1
$region0: #{_pairwise_dist_impl.1}
  #allocation0 [shape = 'u32[]', space=smem, size = 0x4, offset = 0x4, fixed_abs, tag = 'smem constant byte address 0x4 - core index']
  #allocation1 [shape = 'u32[144,128]{1,0:T(1,128)}', space=vmem, size = 0x12000, scoped, tag = 'internal scratch']
  #allocation2 [shape = 'f32[16,128]{1,0:T(8,128)}', space=vmem, size = 0x2000, scoped, tag = 'scratch operand']
  %s0 = inlined_call_operand.vmem [shape: f32[128,32], index: 0, kind: input, shape index: {}, may-alias: {0,1}]
  %s1 = inlined_call_operand.vmem [shape: f32[128,32], index: 1, kind: input, shape index: {}, may-alias: {0,1}]
  %s2 = inlined_call_operand.vmem [shape: f32[128,1], index: 2, kind: input, shape index: {}]
  %s3 = inlined_call_operand.vmem [shape: f32[1,128], index: 3, kind: input, shape index: {}]
  %s4 = inlined_call_operand.hbm [shape: f32[16,16], index: 4, kind: output, shape index: {}]
  %s5 = sld [smem:[#allocation0]]
  $region34: #{_pairwise_dist_impl.1} parent=0
    _
  %s7 = ssub.s32 1, %s5
  %s8 = scalar_select 0, %s7, %s5
  $region1: #{_pairwise_dist_impl.1} parent=0
    #allocation3 [shape = 'u8[8192]{0}', space=vmem, size = 0x2000, scoped, tag = 'output window, operand 0, single buffered']
    #allocation4 [shape = 's32[1]{0}', space=sflag, size = 0x4, scoped, tag = 'scoped memory for _pairwise_dist_impl.1']
    %9 = vsyncpa [#allocation4], 0
    // Predicated region
    $region2: #{_pairwise_dist_impl.1} parent=1 // pred_check
      _
    $region3: #{_pairwise_dist_impl.1} parent=1 // pred_check_branch
      %11 = sbr.rel (0) target = $region5
    $region4: #{_pairwise_dist_impl.1} parent=1 // pred_region
      _
    $region5: #{_pairwise_dist_impl.1} parent=1 // pred_fallthru
      _
    // Predicated region
    $region6: #{_pairwise_dist_impl.1} parent=1 // pred_check
      _
    $region7: #{_pairwise_dist_impl.1} parent=1 // pred_check_branch
      %13 = sbr.rel (0) target = $region9
    $region8: #{_pairwise_dist_impl.1} parent=1 // pred_region
      _
    $region9: #{_pairwise_dist_impl.1} parent=1 // pred_fallthru
      _
    // Predicated region
    $region10: #{_pairwise_dist_impl.1} parent=1 // pred_check
      _
    $region11: #{_pairwise_dist_impl.1} parent=1 // pred_check_branch
      %15 = sbr.rel (0) target = $region13
    $region12: #{_pairwise_dist_impl.1} parent=1 // pred_region
      _
    $region13: #{_pairwise_dist_impl.1} parent=1 // pred_fallthru
      _
    // Predicated region
    $region14: #{_pairwise_dist_impl.1} parent=1 // pred_check
      _
    $region15: #{_pairwise_dist_impl.1} parent=1 // pred_check_branch
      %17 = sbr.rel (0) target = $region17
    $region16: #{_pairwise_dist_impl.1} parent=1 // pred_region
      _
    $region17: #{_pairwise_dist_impl.1} parent=1 // pred_fallthru
      _
    %p18 = scmp.eq.s32.totalorder 0, 0
    // Predicated region
    $region18: #{_pairwise_dist_impl.1} parent=1 // pred_check
      %p19 = pneg %p18
    $region19: #{_pairwise_dist_impl.1} parent=1 // pred_check_branch
      %21 = sbr.rel (%p19) target = $region21
    $region20: #{_pairwise_dist_impl.1} parent=1 // pred_region
      %22 = vst [vmem:[#allocation2] sm:$0xff] 0.0
      %23 = vst [vmem:[#allocation2 + $0x8] sm:$0xff] 0.0
    $region21: #{_pairwise_dist_impl.1} parent=1 // pred_fallthru
      _
    %v24 = vld [vmem:[#allocation2] sm:$0xff]
    %v25 = vld [vmem:[#allocation2 + $0x8] sm:$0xff]
    %v26 = vld [vmem:[%s0] sm:$0xff]
    %v27 = vld [vmem:[%s0 + $0x8] sm:$0xff]
    %v28 = vld [vmem:[%s1] sm:$0xff]
    %v29 = vld [vmem:[%s1 + $0x8] sm:$0xff]
    %v30 = vld [vmem:[%s1 + $0x10] sm:$0xff]
    %v31 = vld [vmem:[%s1 + $0x18] sm:$0xff]
    %v32 = vld [vmem:[%s1 + $0x20] sm:$0xff]
    %v33 = vld [vmem:[%s1 + $0x28] sm:$0xff]
    %v34 = vld [vmem:[%s1 + $0x30] sm:$0xff]
    %v35 = vld [vmem:[%s1 + $0x38] sm:$0xff]
    %v36 = vld [vmem:[%s1 + $0x40] sm:$0xff]
    %v37 = vld [vmem:[%s1 + $0x48] sm:$0xff]
    %v38 = vld [vmem:[%s1 + $0x50] sm:$0xff]
    %v39 = vld [vmem:[%s1 + $0x58] sm:$0xff]
    %v40 = vld [vmem:[%s1 + $0x60] sm:$0xff]
    %v41 = vld [vmem:[%s1 + $0x68] sm:$0xff]
    %v42 = vld [vmem:[%s1 + $0x70] sm:$0xff]
    %v43 = vld [vmem:[%s1 + $0x78] sm:$0xff]
    %vm44 = vcmask 261120
    %v46 = vsel %vm44, %v26, 0
    %v49 = vsel %vm44, %v27, 0
    %v52 = vsel %vm44, %v28, 0
    %v55 = vsel %vm44, %v29, 0
    %v58 = vsel %vm44, %v30, 0
    %v61 = vsel %vm44, %v31, 0
    %v64 = vsel %vm44, %v32, 0
    %v67 = vsel %vm44, %v33, 0
    %v70 = vsel %vm44, %v34, 0
    %v73 = vsel %vm44, %v35, 0
    %v76 = vsel %vm44, %v36, 0
    %v79 = vsel %vm44, %v37, 0
    %v82 = vsel %vm44, %v38, 0
    %v85 = vsel %vm44, %v39, 0
    %v88 = vsel %vm44, %v40, 0
    %v91 = vsel %vm44, %v41, 0
    %v94 = vsel %vm44, %v42, 0
    %v97 = vsel %vm44, %v43, 0
    %99 = vmatprep.subr.mxu0 0.0
    %100 = vmatpush1.xpose.msra.mxu0 %v97
    %101 = vmatprep.subr.mxu0 0.0
    %102 = vmatpush1.xpose.msra.mxu0 %v94
    %103 = vmatprep.subr.mxu0 0.0
    %104 = vmatpush1.xpose.msra.mxu0 %v91
    %105 = vmatprep.subr.mxu0 0.0
    %106 = vmatpush1.xpose.msra.mxu0 %v88
    %107 = vmatprep.subr.mxu0 0.0
    %108 = vmatpush1.xpose.msra.mxu0 %v85
    %109 = vmatprep.subr.mxu0 0.0
    %110 = vmatpush1.xpose.msra.mxu0 %v82
    %111 = vmatprep.subr.mxu0 0.0
    %112 = vmatpush1.xpose.msra.mxu0 %v79
    %113 = vmatprep.subr.mxu0 0.0
    %114 = vmatpush1.xpose.msra.mxu0 %v76
    %115 = vmatprep.subr.mxu0 0.0
    %116 = vmatpush1.xpose.msra.mxu0 %v73
    %117 = vmatprep.subr.mxu0 0.0
    %118 = vmatpush1.xpose.msra.mxu0 %v70
    %119 = vmatprep.subr.mxu0 0.0
    %120 = vmatpush1.xpose.msra.mxu0 %v67
    %121 = vmatprep.subr.mxu0 0.0
    %122 = vmatpush1.xpose.msra.mxu0 %v64
    %123 = vmatprep.subr.mxu0 0.0
    %124 = vmatpush1.xpose.msra.mxu0 %v61
    %125 = vmatprep.subr.mxu0 0.0
    %126 = vmatpush1.xpose.msra.mxu0 %v58
    %127 = vmatprep.subr.mxu0 0.0
    %128 = vmatpush1.xpose.msra.mxu0 %v55
    %129 = vmatprep.subr.mxu0 0.0
    %130 = vmatpush1.xpose.msra.mxu0 %v52
    %131 = vmatprep.subr.mxu0 0.0
    %132 = vmatpush2.xpose.msra.mxu0 0.0
    %133 = vmatprep.subr.mxu0 0.0
    %134 = vmatpush2.xpose.msra.mxu0 0.0
    %135 = vmatprep.subr.mxu0 0.0
    %136 = vmatpush2.xpose.msra.mxu0 0.0
    %137 = vmatprep.subr.mxu0 0.0
    %138 = vmatpush2.xpose.msra.mxu0 0.0
    %139 = vmatprep.subr.mxu0 0.0
    %140 = vmatpush2.xpose.msra.mxu0 0.0
    %141 = vmatprep.subr.mxu0 0.0
    %142 = vmatpush2.xpose.msra.mxu0 0.0
    %143 = vmatprep.subr.mxu0 0.0
    %144 = vmatpush2.xpose.msra.mxu0 0.0
    %145 = vmatprep.subr.mxu0 0.0
    %146 = vmatpush2.xpose.msra.mxu0 0.0
    %147 = vmatprep.subr.mxu0 0.0
    %148 = vmatpush2.xpose.msra.mxu0 0.0
    %149 = vmatprep.subr.mxu0 0.0
    %150 = vmatpush2.xpose.msra.mxu0 0.0
    %151 = vmatprep.subr.mxu0 0.0
    %152 = vmatpush2.xpose.msra.mxu0 0.0
    %153 = vmatprep.subr.mxu0 0.0
    %154 = vmatpush2.xpose.msra.mxu0 0.0
    %155 = vmatprep.subr.mxu0 0.0
    %156 = vmatpush2.xpose.msra.mxu0 0.0
    %157 = vmatprep.subr.mxu0 0.0
    %158 = vmatpush2.xpose.msra.mxu0 0.0
    %159 = vmatprep.subr.mxu0 0.0
    %160 = vmatpush2.xpose.msra.mxu0 0.0
    %161 = vmatprep.subr.mxu0 0.0
    %162 = vmatpush2.xpose.msra.mxu0 0.0
    %163 = vmatprep.mubr.f32.mxu0 0.0
    %164 = vmatmul.mubr.f32.gmra.mxu0 %v46
    %v165 = vpop.f32.mrf.mxu0
    %v166 = vadd.f32 0.0, %v165
    %v167 = vpop.f32.mrf.mxu0
    %168 = vmatprep.mubr.f32.mxu0 0.0
    %169 = vmatmul.mubr.f32.gmra.mxu0 %v49
    %v170 = vpop.f32.mrf.mxu0
    %v171 = vadd.f32 0.0, %v170
    %v172 = vpop.f32.mrf.mxu0
    %173 = vdwg.mxu0
    %v174 = vadd.f32 %v24, %v166
    %v175 = vadd.f32 %v25, %v171
    %176 = vst [vmem:[#allocation2] sm:$0xff] %v174
    %177 = vst [vmem:[#allocation2 + $0x8] sm:$0xff] %v175
    // Predicated region
    $region22: #{_pairwise_dist_impl.1} parent=1 // pred_check
      %p178 = pneg %p18
    $region23: #{_pairwise_dist_impl.1} parent=1 // pred_check_branch
      %180 = sbr.rel (%p178) target = $region25
    $region24: #{_pairwise_dist_impl.1} parent=1 // pred_region
      %v181 = vld [vmem:[%s2] sm:$0xff]
      %v182 = vld [vmem:[%s2 + $0x8] sm:$0xff]
      %v183 = vld [vmem:[#allocation2] sm:$0xff]
      %v184 = vld [vmem:[#allocation2 + $0x8] sm:$0xff]
      %v185 = vmul.f32 %v183, 2.0
      %v186 = vmul.f32 %v184, 2.0
      %188 = vset.pattern.permute.xlu0 0
      %189 = vperm.xlu0 %188, %v181
      %v190 = vpop.permute.xlu0 %189
      %193 = vset.pattern.permute.xlu0 0
      %194 = vperm.xlu0 %193, %v182
      %v195 = vpop.permute.xlu0 %194
      %v197 = vsub.f32 %v190, %v185
      %v198 = vsub.f32 %v195, %v186
      %v199 = vld [vmem:[%s3] sm:$0x1]
      %v201 = vlaneseq
      %v202 = vshrl.u32 %v201, 7
      %v203 = vsub.s32 0, %v202
      %v204 = vrot.slane %v199, %v203
      %v206 = vadd.f32 %v197, %v204
      %v207 = vadd.f32 %v198, %v204
      %v208 = vmax.f32 %v206, 0.0
      %v209 = vmax.f32 %v207, 0.0
      %210 = vst [vmem:[#allocation3] sm:$0xff] %v208
      %211 = vst [vmem:[#allocation3 + $0x8] sm:$0xff] %v209
    $region25: #{_pairwise_dist_impl.1} parent=1 // pred_fallthru
      _
    // Predicated region
    $region26: #{_pairwise_dist_impl.1} parent=1 // pred_check
      _
    $region27: #{_pairwise_dist_impl.1} parent=1 // pred_check_branch
      %213 = sbr.rel (0) target = $region29
    $region28: #{_pairwise_dist_impl.1} parent=1 // pred_region
      %s215 = ssub.s32 256, 256
      %216 = vsyncadd [#allocation4], %s215
      %s217 = sshll.u32 [#allocation3], 4
      %s218 = int_to_ptr.vmem [resolvable:$true] %s217
      %223 = dma.vmem_to_hbm [thread:$0]  %s218, 256, %s4, [#allocation4], 128, 128, 8
    $region29: #{_pairwise_dist_impl.1} parent=1 // pred_fallthru
      _
    // Predicated region
    $region30: #{_pairwise_dist_impl.1} parent=1 // pred_check
      _
    $region31: #{_pairwise_dist_impl.1} parent=1 // pred_check_branch
      %225 = sbr.rel (0) target = $region33
    $region32: #{_pairwise_dist_impl.1} parent=1 // pred_region
      %226 = dma.done [#allocation4], 256
    $region33: #{_pairwise_dist_impl.1} parent=1 // pred_fallthru
      _
    %227 = vsyncpa [#allocation4], 1

</llo_original>
